<compile_context>
chip_gen: v6e
topology: v6e:2x2x1
jax: 0.10.0
libtpu: 0.0.40
codegen_flags: <defaults>
</compile_context>

<pallas_src>
import functools

import numpy as np
import jax
import jax.numpy as jnp
from jax import lax
from jax.experimental import pallas as pl
from jax.experimental.pallas import tpu as pltpu


def _cdiv(a, b):
    return -(-a // b)


def _round_up(a, b):
    return _cdiv(a, b) * b


# ----------------------------------------------------------------------------
# Kernels
# ----------------------------------------------------------------------------
def _eqv_rmsnorm_affine_kernel(x_ref, w_ref, o_ref, *, eps: float,
                               norm_scale: float):
    """x_ref: (tn, S*C) block; w_ref: (1, S*C) pre-expanded f32 affine weight."""
    x32 = x_ref[...].astype(jnp.float32)                      # compute in f32
    ssq = jnp.sum(x32 * x32, axis=-1, keepdims=True)          # (tn, 1) on XLU
    inv = lax.rsqrt(ssq * norm_scale + eps)                   # (tn, 1) on EUP
    o_ref[...] = (x32 * inv * w_ref[...]).astype(o_ref.dtype)


def _eqv_rmsnorm_kernel(x_ref, o_ref, *, eps: float, norm_scale: float):
    """affine=False specialization: no weight operand, no extra multiply."""
    x32 = x_ref[...].astype(jnp.float32)
    ssq = jnp.sum(x32 * x32, axis=-1, keepdims=True)
    inv = lax.rsqrt(ssq * norm_scale + eps)
    o_ref[...] = (x32 * inv).astype(o_ref.dtype)


# ----------------------------------------------------------------------------
# Chip-generation-aware tuning
# ----------------------------------------------------------------------------
def _chip_tuning():
    """Return (target_block_bytes, vmem_limit_bytes, want_even_grid)."""
    kind = ""
    try:
        kind = jax.devices()[0].device_kind.lower()
    except Exception:
        pass
    if "v7" in kind:
        # 64 MiB VMEM per TC, 2 TCs share the parallel N axis.
        return 4 << 20, 48 << 20, True
    if "v6" in kind:
        # 128 MiB VMEM, single TC: big streaming blocks, raise scoped limit.
        return 12 << 20, 96 << 20, False
    if "v5 lite" in kind or "v5e" in kind or "v5lite" in kind:
        # 128 MiB VMEM but 16 MiB default scoped limit: must raise explicitly.
        return 6 << 20, 56 << 20, False
    # Unknown generation: conservative block + limit.
    return 4 << 20, 32 << 20, False


# ----------------------------------------------------------------------------
# Wrapper
# ----------------------------------------------------------------------------
def equivariant_rms_norm_sh(node_input: jax.Array,
                            affine_weight: jax.Array | None,
                            *,
                            lmax: int,
                            eps: float = 1e-5,
                            normalization: str = "component") -> jax.Array:
    """Forward pass of EquivariantRMSNormArraySphericalHarmonics.

    node_input:    [N, (lmax+1)^2, C]
    affine_weight: [lmax+1, C] or None (affine=False)
    """
    assert normalization in ("norm", "component")
    N, S, C = node_input.shape
    assert S == (lmax + 1) ** 2, "sphere_basis must equal (lmax+1)^2"
    SC = S * C
    out_dtype = node_input.dtype

    target_block_bytes, vmem_limit_bytes, want_even_grid = _chip_tuning()

    # Collapse trailing dims -> lane-dense 2D slab (free contiguous reshape).
    x2d = node_input.reshape(N, SC)

    # Keep the lane axis a multiple of 128 so the store path uses unmasked
    # `vst` (biggest measured store-path lever).  Zero padding is harmless:
    # padded columns add 0 to the sum of squares and are sliced off afterwards.
    SC_pad = _round_up(SC, 128)
    if SC_pad != SC:
        x2d = jnp.pad(x2d, ((0, 0), (0, SC_pad - SC)))

    has_affine = affine_weight is not None
    if has_affine:
        # Expand [lmax+1, C] -> [1, S*C]: degree l repeated (2l+1) times.
        deg = np.repeat(np.arange(lmax + 1),
                        [2 * l + 1 for l in range(lmax + 1)])
        w_flat = jnp.asarray(affine_weight, jnp.float32)[deg, :].reshape(1, SC)
        if SC_pad != SC:
            w_flat = jnp.pad(w_flat, ((0, 0), (0, SC_pad - SC)))

    # 'component': mean over s then mean over c == sum/(S*C)
    # 'norm'     : sum  over s then mean over c == sum/C
    norm_scale = (1.0 / C) if normalization == "norm" else (1.0 / SC)

    # ---- row-tile selection (dtype + VMEM-budget aware) ---------------------
    itemsize = jnp.dtype(node_input.dtype).itemsize
    row_quant = {4: 8, 2: 16, 1: 32}.get(itemsize, 8)   # sublane quantum
    bytes_per_row_io = max(SC_pad * itemsize, 1)
    bytes_per_row_f32 = SC_pad * 4
    # Live VMEM per row of block: double-buffered in + out (4x io) plus ~2
    # full-block f32 compute temps (matters for bf16/int8 inputs).
    bytes_per_row_live = 4 * bytes_per_row_io + 2 * bytes_per_row_f32
    vmem_budget = int(0.7 * vmem_limit_bytes)

    tn = max(1, target_block_bytes // bytes_per_row_io)
    tn = min(tn, max(row_quant, vmem_budget // bytes_per_row_live))
    if tn >= N:
        tn = N                                          # single full block: always legal
    else:
        tn = max(row_quant, (tn // row_quant) * row_quant)
    grid_n = _cdiv(N, tn)

    # Megacore chips (v7x): keep the parallel grid even so both TensorCores
    # get a balanced share of this bandwidth-bound stream.
    if want_even_grid and grid_n % 2 == 1 and N > row_quant:
        tn_even = max(row_quant, _round_up(_cdiv(N, grid_n + 1), row_quant))
        if tn_even < N and _cdiv(N, tn_even) % 2 == 0:
            tn = tn_even
            grid_n = _cdiv(N, tn)

    cost = pl.CostEstimate(
        flops=3 * N * SC_pad,
        transcendentals=N,
        bytes_accessed=2 * N * SC_pad * itemsize + SC_pad * 4,
    )
    cparams = pltpu.CompilerParams(
        dimension_semantics=("parallel",),
        vmem_limit_bytes=int(vmem_limit_bytes),
    )

    if has_affine:
        kernel = functools.partial(_eqv_rmsnorm_affine_kernel,
                                   eps=float(eps), norm_scale=float(norm_scale))
        in_specs = [
            pl.BlockSpec((tn, SC_pad), lambda i: (i, 0)),
            pl.BlockSpec((1, SC_pad), lambda i: (0, 0)),   # weight reused each step
        ]
        operands = (x2d, w_flat)
    else:
        kernel = functools.partial(_eqv_rmsnorm_kernel,
                                   eps=float(eps), norm_scale=float(norm_scale))
        in_specs = [pl.BlockSpec((tn, SC_pad), lambda i: (i, 0))]
        operands = (x2d,)

    out2d = pl.pallas_call(
        kernel,
        out_shape=jax.ShapeDtypeStruct((N, SC_pad), out_dtype),
        grid_spec=pltpu.PrefetchScalarGridSpec(
            num_scalar_prefetch=0,
            grid=(grid_n,),
            in_specs=in_specs,
            out_specs=pl.BlockSpec((tn, SC_pad), lambda i: (i, 0)),
        ),
        compiler_params=cparams,
        cost_estimate=cost,
    )(*operands)

    if SC_pad != SC:
        out2d = out2d[:, :SC]
    return out2d.reshape(N, S, C)


# ----------------------------------------------------------------------------
# Pure-JAX reference (transliteration of the PyTorch forward)
# ----------------------------------------------------------------------------
def _reference(x, affine_weight, *, lmax, eps=1e-5, normalization="component"):
    x32 = x.astype(jnp.float32)
    if normalization == "norm":
        fn = jnp.sum(x32 ** 2, axis=1, keepdims=True)
    else:
        fn = jnp.mean(x32 ** 2, axis=1, keepdims=True)
    fn = jnp.mean(fn, axis=2, keepdims=True)
    inv = (fn + eps) ** -0.5
    outs = []
    for l in range(lmax + 1):
        start, length = l * l, 2 * l + 1
        feat = x32[:, start:start + length, :]
        if affine_weight is not None:
            scale = inv * jnp.asarray(affine_weight, jnp.float32)[l].reshape(1, 1, -1)
        else:
            scale = inv
        outs.append(feat * scale)
    return jnp.concatenate(outs, axis=1).astype(x.dtype)


if __name__ == "__main__":
    key = jax.random.PRNGKey(0)
    kx, kw, kx2 = jax.random.split(key, 3)

    # Test 1: f32, affine=True, 'component' (lane width S*C = 512, 128-aligned).
    lmax, C, N = 3, 32, 8
    S = (lmax + 1) ** 2                                 # 16
    x = jax.random.normal(kx, (N, S, C), dtype=jnp.float32)
    w = 1.0 + 0.1 * jax.random.normal(kw, (lmax + 1, C), dtype=jnp.float32)

    y = jax.block_until_ready(
        equivariant_rms_norm_sh(x, w, lmax=lmax, eps=1e-5,
                                normalization="component"))
    y_ref = _reference(x, w, lmax=lmax, eps=1e-5, normalization="component")
    assert y.shape == x.shape and y.dtype == x.dtype
    assert jnp.allclose(y, y_ref, atol=1e-5, rtol=1e-4), "f32 affine mismatch"

    # Test 2: bf16 input, affine=True (f32 accumulation inside the kernel).
    xb = x.astype(jnp.bfloat16)
    yb = jax.block_until_ready(
        equivariant_rms_norm_sh(xb, w, lmax=lmax, eps=1e-5,
                                normalization="component"))
    yb_ref = _reference(xb, w, lmax=lmax, eps=1e-5, normalization="component")
    assert yb.dtype == jnp.bfloat16
    assert jnp.allclose(yb.astype(jnp.float32), yb_ref.astype(jnp.float32),
                        atol=2e-2, rtol=2e-2), "bf16 affine mismatch"

    # Test 3: affine=False, 'norm', ragged lane width (S*C = 20 -> padded to 128).
    lmax2, C2, N2 = 1, 5, 12
    S2 = (lmax2 + 1) ** 2                               # 4
    x2 = jax.random.normal(kx2, (N2, S2, C2), dtype=jnp.float32)
    y2 = jax.block_until_ready(
        equivariant_rms_norm_sh(x2, None, lmax=lmax2, eps=1e-5,
                                normalization="norm"))
    y2_ref = _reference(x2, None, lmax=lmax2, eps=1e-5, normalization="norm")
    assert y2.shape == x2.shape and y2.dtype == x2.dtype
    assert jnp.allclose(y2, y2_ref, atol=1e-5, rtol=1e-4), "no-affine mismatch"

    print("KERNEL_OK")
</pallas_src>

<mosaic_0001>
module attributes {stable_mosaic.version = 11 : i64} {
  func.func @_eqv_rmsnorm_affine_kernel(%arg0: i32, %arg1: memref<8x512xf32, #tpu.memory_space<vmem>>, %arg2: memref<1x512xf32, #tpu.memory_space<vmem>>, %arg3: memref<8x512xf32, #tpu.memory_space<vmem>>) attributes {dimension_semantics = [#tpu.dimension_semantics<parallel>], iteration_bounds = array<i64: 1>, scalar_prefetch = 0 : i64, scratch_operands = 0 : i64, tpu.core_type = #tpu.core_type<tc>, window_params = [{transform_indices = @transform_0, window_bounds = array<i64: 8, 512>}, {pipeline_mode = #tpu.pipeline_mode<synchronous>, transform_indices = @transform_1, window_bounds = array<i64: 1, 512>}, {transform_indices = @transform_2, window_bounds = array<i64: 8, 512>}]} {
    %c0 = arith.constant 0 : index
    %c0_0 = arith.constant 0 : index
    %0 = vector.load %arg1[%c0, %c0_0] : memref<8x512xf32, #tpu.memory_space<vmem>>, vector<8x512xf32>
    %1 = arith.mulf %0, %0 : vector<8x512xf32>
    %cst = arith.constant dense<0.000000e+00> : vector<8xf32>
    %2 = vector.multi_reduction <add>, %1, %cst [1] : vector<8x512xf32> to vector<8xf32>
    %3 = vector.shape_cast %2 : vector<8xf32> to vector<8x1xf32>
    %cst_1 = arith.constant 0.001953125 : f32
    %4 = vector.broadcast %cst_1 : f32 to vector<8x1xf32>
    %5 = arith.mulf %3, %4 : vector<8x1xf32>
    %cst_2 = arith.constant 9.99999974E-6 : f32
    %6 = vector.broadcast %cst_2 : f32 to vector<8x1xf32>
    %7 = arith.addf %5, %6 : vector<8x1xf32>
    %8 = math.rsqrt %7 : vector<8x1xf32>
    %9 = vector.broadcast %8 : vector<8x1xf32> to vector<8x512xf32>
    %10 = arith.mulf %0, %9 : vector<8x512xf32>
    %c0_3 = arith.constant 0 : index
    %c0_4 = arith.constant 0 : index
    %11 = vector.load %arg2[%c0_3, %c0_4] : memref<1x512xf32, #tpu.memory_space<vmem>>, vector<1x512xf32>
    %12 = vector.broadcast %11 : vector<1x512xf32> to vector<8x512xf32>
    %13 = arith.mulf %10, %12 : vector<8x512xf32>
    %c0_5 = arith.constant 0 : index
    %c0_6 = arith.constant 0 : index
    %14 = vector.load %arg3[%c0_5, %c0_6] : memref<8x512xf32, #tpu.memory_space<vmem>>, vector<8x512xf32>
    tpu.vector_store %arg3[%c0_5, %c0_6], %13 {strides = array<i32>} : memref<8x512xf32, #tpu.memory_space<vmem>>, vector<8x512xf32>,
    return
  }
  func.func @transform_0(%arg0: i32) -> (i32, i32) {
    %c0_i32 = arith.constant 0 : i32
    %c0_i32_0 = arith.constant 0 : i32
    return %arg0, %c0_i32 : i32, i32
  }
  func.func @transform_1(%arg0: i32) -> (i32, i32) {
    %c0_i32 = arith.constant 0 : i32
    %c0_i32_0 = arith.constant 0 : i32
    %c0_i32_1 = arith.constant 0 : i32
    return %c0_i32, %c0_i32_0 : i32, i32
  }
  func.func @transform_2(%arg0: i32) -> (i32, i32) {
    %c0_i32 = arith.constant 0 : i32
    %c0_i32_0 = arith.constant 0 : i32
    return %arg0, %c0_i32 : i32, i32
  }
}

</mosaic_0001>

<llo_original>
// kernel: tpu_custom_call.1
$region0: #{tpu_custom_call.1}
  #allocation0 [shape = 'u32[]', space=smem, size = 0x4, offset = 0x4, fixed_abs, tag = 'smem constant byte address 0x4 - core index']
  #allocation1 [shape = 'u32[144,128]{1,0:T(1,128)}', space=vmem, size = 0x12000, scoped, tag = 'internal scratch']
  %s0 = inlined_call_operand.hbm [shape: f32[8,512], index: 0, kind: input, shape index: {}]
  %s1 = inlined_call_operand.hbm [shape: f32[1,512], index: 1, kind: input, shape index: {}]
  %s2 = inlined_call_operand.hbm [shape: f32[8,512], index: 2, kind: output, shape index: {}]
  %s3 = sld [smem:[#allocation0]]
  $region26: #{tpu_custom_call.1} parent=0
    _
  %s5 = ssub.s32 1, %s3
  %s6 = scalar_select 0, %s5, %s3
  $region1: #{tpu_custom_call.1} parent=0
    #allocation2 [shape = 'u8[16384]{0}', space=vmem, size = 0x4000, scoped, tag = 'input window, operand 0, single buffered']
    #allocation3 [shape = 's32[1]{0}', space=sflag, size = 0x4, scoped, tag = 'scoped memory for tpu_custom_call.1']
    #allocation4 [shape = 's32[1]{0}', space=sflag, size = 0x4, scoped, tag = 'scoped memory for tpu_custom_call.1']
    #allocation5 [shape = 'u8[2048]{0}', space=vmem, size = 0x800, scoped, tag = 'input window, operand 1, single buffered']
    #allocation6 [shape = 's32[1]{0}', space=sflag, size = 0x4, scoped, tag = 'scoped memory for tpu_custom_call.1']
    #allocation7 [shape = 'u8[16384]{0}', space=vmem, size = 0x4000, scoped, tag = 'output window, operand 0, single buffered']
    %7 = vsyncpa [#allocation3], 0
    %8 = vsyncpa [#allocation6], 0
    %9 = vsyncpa [#allocation4], 0
    // Predicated region
    $region2: #{tpu_custom_call.1} parent=1 // pred_check
      _
    $region3: #{tpu_custom_call.1} parent=1 // pred_check_branch
      %11 = sbr.rel (0) target = $region5
    $region4: #{tpu_custom_call.1} parent=1 // pred_region
      %s13 = ssub.s32 512, 512
      %14 = vsyncadd [#allocation3], %s13
      %s16 = sshll.u32 [#allocation2], 4
      %s17 = int_to_ptr.vmem [resolvable:$true] %s16
      %19 = dma.hbm_to_vmem [thread:$0]  %s0, 512, %s17, [#allocation3]
    $region5: #{tpu_custom_call.1} parent=1 // pred_fallthru
      _
    // Predicated region
    $region6: #{tpu_custom_call.1} parent=1 // pred_check
      _
    $region7: #{tpu_custom_call.1} parent=1 // pred_check_branch
      %21 = sbr.rel (0) target = $region9
    $region8: #{tpu_custom_call.1} parent=1 // pred_region
      %s23 = ssub.s32 64, 64
      %24 = vsyncadd [#allocation6], %s23
      %s26 = sshll.u32 [#allocation5], 4
      %s27 = int_to_ptr.vmem [resolvable:$true] %s26
      %29 = dma.hbm_to_vmem [thread:$0]  %s1, 64, %s27, [#allocation6]
    $region9: #{tpu_custom_call.1} parent=1 // pred_fallthru
      _
    // Predicated region
    $region10: #{tpu_custom_call.1} parent=1 // pred_check
      _
    $region11: #{tpu_custom_call.1} parent=1 // pred_check_branch
      %31 = sbr.rel (0) target = $region13
    $region12: #{tpu_custom_call.1} parent=1 // pred_region
      %32 = dma.done [#allocation3], 512
    $region13: #{tpu_custom_call.1} parent=1 // pred_fallthru
      _
    // Predicated region
    $region14: #{tpu_custom_call.1} parent=1 // pred_check
      _
    $region15: #{tpu_custom_call.1} parent=1 // pred_check_branch
      %34 = sbr.rel (0) target = $region17
    $region16: #{tpu_custom_call.1} parent=1 // pred_region
      %35 = dma.done [#allocation6], 64
    $region17: #{tpu_custom_call.1} parent=1 // pred_fallthru
      _
    %v36 = vld [vmem:[#allocation2] sm:$0xff]
    %v37 = vld [vmem:[#allocation2 + $0x8] sm:$0xff]
    %v38 = vld [vmem:[#allocation2 + $0x10] sm:$0xff]
    %v39 = vld [vmem:[#allocation2 + $0x18] sm:$0xff]
    %v40 = vmul.f32 %v36, %v36
    %v41 = vmul.f32 %v37, %v37
    %v42 = vmul.f32 %v38, %v38
    %v43 = vmul.f32 %v39, %v39
    %v44 = vadd.f32 %v40, %v41
    %v45 = vadd.f32 %v44, %v42
    %v46 = vadd.f32 %v45, %v43
    %47 = vadd.xlane.f32.xlu0 %v46
    %v48 = vpop.xlane.xlu0 %47
    %v49 = vmul.f32 %v48, 0.001953125
    %v50 = vadd.f32 %v49, 1e-05
    %v51 = vrsqrt.pop %v50
    %v52 = vmul.f32 %v36, %v51
    %v53 = vmul.f32 %v37, %v51
    %v54 = vmul.f32 %v38, %v51
    %v55 = vmul.f32 %v39, %v51
    %v56 = vld [vmem:[#allocation5] sm:$0xf]
    %v58 = vlaneseq
    %v59 = vshrl.u32 %v58, 7
    %v60 = vsub.s32 0, %v59
    %v61 = vrot.slane %v56, %v60
    %v62 = vlaneseq
    %v63 = vshrl.u32 %v62, 7
    %v64 = vsub.s32 1, %v63
    %v65 = vrot.slane %v56, %v64
    %v66 = vlaneseq
    %v67 = vshrl.u32 %v66, 7
    %v68 = vsub.s32 2, %v67
    %v69 = vrot.slane %v56, %v68
    %v70 = vlaneseq
    %v71 = vshrl.u32 %v70, 7
    %v72 = vsub.s32 3, %v71
    %v73 = vrot.slane %v56, %v72
    %v78 = vmul.f32 %v52, %v61
    %v79 = vmul.f32 %v53, %v65
    %v80 = vmul.f32 %v54, %v69
    %v81 = vmul.f32 %v55, %v73
    %82 = vst [vmem:[#allocation7] sm:$0xff] %v78
    %83 = vst [vmem:[#allocation7 + $0x8] sm:$0xff] %v79
    %84 = vst [vmem:[#allocation7 + $0x10] sm:$0xff] %v80
    %85 = vst [vmem:[#allocation7 + $0x18] sm:$0xff] %v81
    // Predicated region
    $region18: #{tpu_custom_call.1} parent=1 // pred_check
      _
    $region19: #{tpu_custom_call.1} parent=1 // pred_check_branch
      %87 = sbr.rel (0) target = $region21
    $region20: #{tpu_custom_call.1} parent=1 // pred_region
      %s89 = ssub.s32 512, 512
      %90 = vsyncadd [#allocation4], %s89
      %s92 = sshll.u32 [#allocation7], 4
      %s93 = int_to_ptr.vmem [resolvable:$true] %s92
      %95 = dma.vmem_to_hbm [thread:$0]  %s93, 512, %s2, [#allocation4]
    $region21: #{tpu_custom_call.1} parent=1 // pred_fallthru
      _
    // Predicated region
    $region22: #{tpu_custom_call.1} parent=1 // pred_check
      _
    $region23: #{tpu_custom_call.1} parent=1 // pred_check_branch
      %97 = sbr.rel (0) target = $region25
    $region24: #{tpu_custom_call.1} parent=1 // pred_region
      %98 = dma.done [#allocation4], 512
    $region25: #{tpu_custom_call.1} parent=1 // pred_fallthru
      _
    %99 = vsyncpa [#allocation3], 1
    %100 = vsyncpa [#allocation6], 1
    %101 = vsyncpa [#allocation4], 1

</llo_original>
